<compile_context>
chip_gen: v7x
topology: tpu7x:2x2x1
jax: 0.10.0
libtpu: 0.0.40
codegen_flags: <defaults>
</compile_context>

<pallas_src>
import functools

import jax
import jax.numpy as jnp
from jax.experimental import pallas as pl
from jax.experimental.pallas import tpu as pltpu

TRIPLET_MARGIN = 5.0
_PAIRWISE_EPS = 1e-6          # torch F.pairwise_distance default eps
_OUT_LANES = 128              # lane-dense output slab width
_TARGET_STEP_BYTES = 8 << 20  # ~8 MiB of input bytes per grid step (DMA sweet spot)


def _round_up(x, m):
    return ((x + m - 1) // m) * m


def _vmem_capacity_bytes():
    """Physical VMEM of the local TPU; conservative fallback if unknown."""
    try:
        info = pltpu.get_tpu_info()
        v = getattr(info, "vmem_capacity_bytes", None)
        if v:
            return int(v)
    except Exception:
        pass
    return 64 << 20           # v7x-sized fallback: safe on every generation


def _multi_tensorcore():
    """True when >1 TensorCore shares the grid (v4/v5p megacore, v7x)."""
    try:
        kind = jax.devices()[0].device_kind.lower()
    except Exception:
        return False
    if any(s in kind for s in ("lite", "v5e", "v6e", "v2", "v3")):
        return False
    return any(s in kind for s in ("v4", "v5p", "v5 p", "v7", "7x"))


def _pick_block_rows(batch, d, itemsize, multi_tc, vmem_budget):
    """Rows per grid step: byte-targeted, VMEM-bounded, sublane-aligned."""
    d_pad = _round_up(d, 128)                     # VMEM pads the lane dim to 128
    sub = 8 * max(1, 4 // max(itemsize, 1))       # 8 rows f32, 16 bf16, 32 int8
    # Per-row VMEM: 3 inputs x 2 pipeline buffers (input dtype) + ~4 f32-wide
    # temporaries (casts / diffs / squares) the compiler materializes.
    per_row = 3 * 2 * d_pad * itemsize + 4 * d_pad * 4
    tb = vmem_budget // per_row
    # DMA sweet spot: ~8 MiB of input bytes per step across the three tiles.
    tb = min(tb, _TARGET_STEP_BYTES // (3 * d_pad * itemsize))
    tb = min(tb, _round_up(batch, sub))
    if multi_tc and batch > sub:
        # At least two grid steps so the 'parallel' axis spans both TensorCores.
        tb = min(tb, _round_up(-(-batch // 2), sub))
    return int(max(sub, (tb // sub) * sub))


def _tile_loss_sum(a_ref, p_ref, n_ref, batch, step):
    """Masked sum of relu(d_pos - d_neg + margin) over one batch tile."""
    tb = a_ref.shape[0]
    a = a_ref[...].astype(jnp.float32)
    p = p_ref[...].astype(jnp.float32)
    n = n_ref[...].astype(jnp.float32)

    dp = a - p + _PAIRWISE_EPS
    dn = a - n + _PAIRWISE_EPS
    d_pos = jnp.sqrt(jnp.sum(dp * dp, axis=-1, keepdims=True))   # (tb, 1)
    d_neg = jnp.sqrt(jnp.sum(dn * dn, axis=-1, keepdims=True))   # (tb, 1)
    losses = jnp.maximum(d_pos - d_neg + TRIPLET_MARGIN, 0.0)    # (tb, 1)

    # Mask BEFORE the reduce: padded rows of a ragged last tile sit on
    # unspecified pipeline-buffer contents (possibly NaN/inf).
    row = jax.lax.broadcasted_iota(jnp.int32, (tb, 1), 0)
    valid = (step * tb + row) < batch
    return jnp.sum(jnp.where(valid, losses, 0.0))


def _acc_kernel(a_ref, p_ref, n_ref, o_ref, *, batch):
    """Single-TC path: accumulate into the resident output block; mean at end."""
    i = pl.program_id(0)

    @pl.when(i == 0)
    def _():
        o_ref[...] = jnp.zeros_like(o_ref)

    o_ref[...] = o_ref[...] + _tile_loss_sum(a_ref, p_ref, n_ref, batch, i)

    @pl.when(i == pl.num_programs(0) - 1)
    def _():
        o_ref[...] = o_ref[...] * jnp.float32(1.0 / batch)


def _slab_kernel(a_ref, p_ref, n_ref, o_ref, *, batch):
    """Multi-TC path: one lane-dense (1, 128) partial-sum slab per grid step."""
    i = pl.program_id(0)
    tile_sum = _tile_loss_sum(a_ref, p_ref, n_ref, batch, i)
    lane = jax.lax.broadcasted_iota(jnp.int32, o_ref.shape, 1)
    o_ref[...] = jnp.where(lane == 0, tile_sum, 0.0)


def triplet_loss_c(rep_anchor, rep_pos, rep_neg, *, block_rows=None,
                   force_multi_tc=None):
    """Pallas TripletLossC forward. Inputs: [B, D] each. Returns scalar f32."""
    assert rep_anchor.shape == rep_pos.shape == rep_neg.shape
    assert rep_anchor.ndim == 2
    B, D = rep_anchor.shape
    itemsize = jnp.dtype(rep_anchor.dtype).itemsize

    multi_tc = _multi_tensorcore() if force_multi_tc is None else bool(force_multi_tc)
    vmem_budget = (3 * _vmem_capacity_bytes()) // 4          # 25% headroom

    sub = 8 * max(1, 4 // max(itemsize, 1))
    if block_rows is None:
        tb = _pick_block_rows(B, D, itemsize, multi_tc, vmem_budget)
    else:
        tb = min(int(block_rows), _round_up(B, sub))
        tb = max(sub, (tb // sub) * sub)
    num_tiles = pl.cdiv(B, tb)

    in_spec = pl.BlockSpec((tb, D), lambda i: (i, 0))
    cost = pl.CostEstimate(
        flops=8 * B * D,
        transcendentals=2 * B,
        bytes_accessed=3 * B * D * itemsize + num_tiles * _OUT_LANES * 4,
    )

    if multi_tc:
        kernel = functools.partial(_slab_kernel, batch=B)
        partial_sums = pl.pallas_call(
            kernel,
            out_shape=jax.ShapeDtypeStruct((1, num_tiles * _OUT_LANES), jnp.float32),
            grid_spec=pltpu.PrefetchScalarGridSpec(
                num_scalar_prefetch=0,
                grid=(num_tiles,),
                in_specs=[in_spec, in_spec, in_spec],
                out_specs=pl.BlockSpec((1, _OUT_LANES), lambda i: (0, i)),
            ),
            compiler_params=pltpu.CompilerParams(
                dimension_semantics=("parallel",),
                vmem_limit_bytes=int(vmem_budget),
            ),
            cost_estimate=cost,
        )(rep_anchor, rep_pos, rep_neg)
        # Tiny global reduce in JAX (all non-lane-0 entries are zero).
        return jnp.sum(partial_sums) / jnp.float32(B)

    kernel = functools.partial(_acc_kernel, batch=B)
    out = pl.pallas_call(
        kernel,
        out_shape=jax.ShapeDtypeStruct((1, _OUT_LANES), jnp.float32),
        grid_spec=pltpu.PrefetchScalarGridSpec(
            num_scalar_prefetch=0,
            grid=(num_tiles,),
            in_specs=[in_spec, in_spec, in_spec],
            out_specs=pl.BlockSpec((1, _OUT_LANES), lambda i: (0, 0)),
        ),
        compiler_params=pltpu.CompilerParams(
            dimension_semantics=("arbitrary",),
            vmem_limit_bytes=int(vmem_budget),
        ),
        cost_estimate=cost,
    )(rep_anchor, rep_pos, rep_neg)
    # Every lane of the resident output block holds the final mean; read lane 0.
    return out[0, 0]


def _reference(rep_anchor, rep_pos, rep_neg):
    a = rep_anchor.astype(jnp.float32)
    p = rep_pos.astype(jnp.float32)
    n = rep_neg.astype(jnp.float32)
    dpos = jnp.sqrt(jnp.sum((a - p + _PAIRWISE_EPS) ** 2, axis=-1))
    dneg = jnp.sqrt(jnp.sum((a - n + _PAIRWISE_EPS) ** 2, axis=-1))
    return jnp.mean(jnp.maximum(dpos - dneg + TRIPLET_MARGIN, 0.0))


if __name__ == "__main__":
    key = jax.random.PRNGKey(0)
    k_a, k_p, k_n = jax.random.split(key, 3)

    # Small embedding-triplet shapes.
    B, D = 8, 32
    rep_anchor = jax.random.normal(k_a, (B, D), dtype=jnp.float32)
    rep_pos = jax.random.normal(k_p, (B, D), dtype=jnp.float32)
    rep_neg = jax.random.normal(k_n, (B, D), dtype=jnp.float32)

    loss = jax.block_until_ready(triplet_loss_c(rep_anchor, rep_pos, rep_neg))
    ref = _reference(rep_anchor, rep_pos, rep_neg)
    assert jnp.allclose(loss, ref, rtol=1e-5, atol=1e-4), (loss, ref)

    # Multi-tile grid with a ragged, masked last tile; exercise BOTH code paths
    # (single-TC accumulator and multi-TC parallel slabs) regardless of chip.
    k2a, k2p, k2n = jax.random.split(jax.random.PRNGKey(1), 3)
    B2, D2 = 300, 160
    a2 = jax.random.normal(k2a, (B2, D2), dtype=jnp.float32)
    p2 = jax.random.normal(k2p, (B2, D2), dtype=jnp.float32)
    n2 = jax.random.normal(k2n, (B2, D2), dtype=jnp.float32)
    ref2 = _reference(a2, p2, n2)

    loss_acc = jax.block_until_ready(
        triplet_loss_c(a2, p2, n2, block_rows=64, force_multi_tc=False))
    assert jnp.allclose(loss_acc, ref2, rtol=1e-5, atol=1e-4), (loss_acc, ref2)

    loss_par = jax.block_until_ready(
        triplet_loss_c(a2, p2, n2, block_rows=64, force_multi_tc=True))
    assert jnp.allclose(loss_par, ref2, rtol=1e-5, atol=1e-4), (loss_par, ref2)

    print("KERNEL_OK")
</pallas_src>

<mosaic_0001>
module attributes {stable_mosaic.version = 11 : i64} {
  func.func @_acc_kernel(%arg0: i32, %arg1: memref<8x32xf32, #tpu.memory_space<vmem>>, %arg2: memref<8x32xf32, #tpu.memory_space<vmem>>, %arg3: memref<8x32xf32, #tpu.memory_space<vmem>>, %arg4: memref<1x128xf32, #tpu.memory_space<vmem>>) attributes {dimension_semantics = [#tpu.dimension_semantics<arbitrary>], iteration_bounds = array<i64: 1>, scalar_prefetch = 0 : i64, scratch_operands = 0 : i64, tpu.core_type = #tpu.core_type<tc>, window_params = [{transform_indices = @transform_0, window_bounds = array<i64: 8, 32>}, {transform_indices = @transform_1, window_bounds = array<i64: 8, 32>}, {transform_indices = @transform_2, window_bounds = array<i64: 8, 32>}, {pipeline_mode = #tpu.pipeline_mode<synchronous>, transform_indices = @transform_3, window_bounds = array<i64: 1, 128>}]} {
    %c0_i32 = arith.constant 0 : i32
    %0 = arith.cmpi eq, %arg0, %c0_i32 : i32
    %1 = arith.extui %0 : i1 to i32
    %c0_i32_0 = arith.constant 0 : i32
    %2 = arith.cmpi ne, %1, %c0_i32_0 : i32
    scf.if %2 {
      %cst_20 = arith.constant 0.000000e+00 : f32
      %44 = vector.broadcast %cst_20 : f32 to vector<1x128xf32>
      %c0_21 = arith.constant 0 : index
      %c0_22 = arith.constant 0 : index
      %45 = vector.load %arg4[%c0_21, %c0_22] : memref<1x128xf32, #tpu.memory_space<vmem>>, vector<1x128xf32>
      tpu.vector_store %arg4[%c0_21, %c0_22], %44 {strides = array<i32>} : memref<1x128xf32, #tpu.memory_space<vmem>>, vector<1x128xf32>,
    } else {
    }
    %c0 = arith.constant 0 : index
    %c0_1 = arith.constant 0 : index
    %3 = vector.load %arg4[%c0, %c0_1] : memref<1x128xf32, #tpu.memory_space<vmem>>, vector<1x128xf32>
    %c0_2 = arith.constant 0 : index
    %c0_3 = arith.constant 0 : index
    %4 = vector.load %arg1[%c0_2, %c0_3] : memref<8x32xf32, #tpu.memory_space<vmem>>, vector<8x32xf32>
    %c0_4 = arith.constant 0 : index
    %c0_5 = arith.constant 0 : index
    %5 = vector.load %arg2[%c0_4, %c0_5] : memref<8x32xf32, #tpu.memory_space<vmem>>, vector<8x32xf32>
    %c0_6 = arith.constant 0 : index
    %c0_7 = arith.constant 0 : index
    %6 = vector.load %arg3[%c0_6, %c0_7] : memref<8x32xf32, #tpu.memory_space<vmem>>, vector<8x32xf32>
    %7 = arith.subf %4, %5 : vector<8x32xf32>
    %cst = arith.constant 9.99999997E-7 : f32
    %8 = vector.broadcast %cst : f32 to vector<8x32xf32>
    %9 = arith.addf %7, %8 : vector<8x32xf32>
    %10 = arith.subf %4, %6 : vector<8x32xf32>
    %cst_8 = arith.constant 9.99999997E-7 : f32
    %11 = vector.broadcast %cst_8 : f32 to vector<8x32xf32>
    %12 = arith.addf %10, %11 : vector<8x32xf32>
    %13 = arith.mulf %9, %9 : vector<8x32xf32>
    %cst_9 = arith.constant dense<0.000000e+00> : vector<8xf32>
    %14 = vector.multi_reduction <add>, %13, %cst_9 [1] : vector<8x32xf32> to vector<8xf32>
    %15 = vector.shape_cast %14 : vector<8xf32> to vector<8x1xf32>
    %16 = math.sqrt %15 : vector<8x1xf32>
    %17 = arith.mulf %12, %12 : vector<8x32xf32>
    %cst_10 = arith.constant dense<0.000000e+00> : vector<8xf32>
    %18 = vector.multi_reduction <add>, %17, %cst_10 [1] : vector<8x32xf32> to vector<8xf32>
    %19 = vector.shape_cast %18 : vector<8xf32> to vector<8x1xf32>
    %20 = math.sqrt %19 : vector<8x1xf32>
    %21 = arith.subf %16, %20 : vector<8x1xf32>
    %cst_11 = arith.constant 5.000000e+00 : f32
    %22 = vector.broadcast %cst_11 : f32 to vector<8x1xf32>
    %23 = arith.addf %21, %22 : vector<8x1xf32>
    %cst_12 = arith.constant 0.000000e+00 : f32
    %24 = vector.broadcast %cst_12 : f32 to vector<8x1xf32>
    %25 = arith.maximumf %23, %24 : vector<8x1xf32>
    %26 = tpu.iota {dimensions = array<i32: 0>} : vector<8x1xi32>
    %c8_i32 = arith.constant 8 : i32
    %27 = arith.muli %arg0, %c8_i32 : i32
    %28 = vector.broadcast %27 : i32 to vector<8x1xi32>
    %29 = arith.addi %28, %26 : vector<8x1xi32>
    %c8_i32_13 = arith.constant 8 : i32
    %30 = vector.broadcast %c8_i32_13 : i32 to vector<8x1xi32>
    %31 = arith.cmpi slt, %29, %30 : vector<8x1xi32>
    %cst_14 = arith.constant 0.000000e+00 : f32
    %32 = vector.broadcast %cst_14 : f32 to vector<8x1xf32>
    %33 = arith.select %31, %25, %32 : vector<8x1xi1>, vector<8x1xf32>
    %34 = vector.shape_cast %33 : vector<8x1xf32> to vector<1x8x1xf32>
    %cst_15 = arith.constant dense<0.000000e+00> : vector<1xf32>
    %35 = vector.multi_reduction <add>, %34, %cst_15 [1, 2] : vector<1x8x1xf32> to vector<1xf32>
    %36 = vector.shape_cast %35 : vector<1xf32> to vector<1x1x1xf32>
    %37 = vector.extract %36[0, 0, 0] : f32 from vector<1x1x1xf32>
    %38 = vector.broadcast %37 : f32 to vector<1x128xf32>
    %39 = arith.addf %3, %38 : vector<1x128xf32>
    %c0_16 = arith.constant 0 : index
    %c0_17 = arith.constant 0 : index
    %40 = vector.load %arg4[%c0_16, %c0_17] : memref<1x128xf32, #tpu.memory_space<vmem>>, vector<1x128xf32>
    tpu.vector_store %arg4[%c0_16, %c0_17], %39 {strides = array<i32>} : memref<1x128xf32, #tpu.memory_space<vmem>>, vector<1x128xf32>,
    %c0_i32_18 = arith.constant 0 : i32
    %41 = arith.cmpi eq, %arg0, %c0_i32_18 : i32
    %42 = arith.extui %41 : i1 to i32
    %c0_i32_19 = arith.constant 0 : i32
    %43 = arith.cmpi ne, %42, %c0_i32_19 : i32
    scf.if %43 {
      %c0_20 = arith.constant 0 : index
      %c0_21 = arith.constant 0 : index
      %44 = vector.load %arg4[%c0_20, %c0_21] : memref<1x128xf32, #tpu.memory_space<vmem>>, vector<1x128xf32>
      %cst_22 = arith.constant 1.250000e-01 : f32
      %45 = vector.broadcast %cst_22 : f32 to vector<1x128xf32>
      %46 = arith.mulf %44, %45 : vector<1x128xf32>
      %c0_23 = arith.constant 0 : index
      %c0_24 = arith.constant 0 : index
      %47 = vector.load %arg4[%c0_23, %c0_24] : memref<1x128xf32, #tpu.memory_space<vmem>>, vector<1x128xf32>
      tpu.vector_store %arg4[%c0_23, %c0_24], %46 {strides = array<i32>} : memref<1x128xf32, #tpu.memory_space<vmem>>, vector<1x128xf32>,
    } else {
    }
    return
  }
  func.func @transform_0(%arg0: i32) -> (i32, i32) {
    %c0_i32 = arith.constant 0 : i32
    %c0_i32_0 = arith.constant 0 : i32
    return %arg0, %c0_i32 : i32, i32
  }
  func.func @transform_1(%arg0: i32) -> (i32, i32) {
    %c0_i32 = arith.constant 0 : i32
    %c0_i32_0 = arith.constant 0 : i32
    return %arg0, %c0_i32 : i32, i32
  }
  func.func @transform_2(%arg0: i32) -> (i32, i32) {
    %c0_i32 = arith.constant 0 : i32
    %c0_i32_0 = arith.constant 0 : i32
    return %arg0, %c0_i32 : i32, i32
  }
  func.func @transform_3(%arg0: i32) -> (i32, i32) {
    %c0_i32 = arith.constant 0 : i32
    %c0_i32_0 = arith.constant 0 : i32
    %c0_i32_1 = arith.constant 0 : i32
    return %c0_i32, %c0_i32_0 : i32, i32
  }
}

</mosaic_0001>

<llo_original>
// kernel: tpu_custom_call.1
$region0: #{tpu_custom_call.1}
  #allocation0 [shape = 'u32[]', space=smem, size = 0x4, offset = 0x4, fixed_abs, tag = 'smem constant byte address 0x4 - core index']
  #allocation1 [shape = 'u32[144,128]{1,0:T(1,128)}', space=vmem, size = 0x12000, scoped, tag = 'internal scratch']
  %s0 = inlined_call_operand.hbm [shape: f32[8,32], index: 0, kind: input, shape index: {}]
  %s1 = inlined_call_operand.hbm [shape: f32[8,32], index: 1, kind: input, shape index: {}]
  %s2 = inlined_call_operand.hbm [shape: f32[8,32], index: 2, kind: input, shape index: {}]
  %s3 = inlined_call_operand.hbm [shape: f32[1,128], index: 3, kind: output, shape index: {}]
  %s4 = sld [smem:[#allocation0]]
  $region42: #{tpu_custom_call.1} parent=0
    _
  %s6 = ssub.s32 1, %s4
  %s7 = scalar_select 0, %s6, %s4
  $region1: #{tpu_custom_call.1} parent=0
    #allocation2 [shape = 'u8[4096]{0}', space=vmem, size = 0x1000, scoped, tag = 'input window, operand 0, single buffered']
    #allocation3 [shape = 's32[1]{0}', space=sflag, size = 0x4, scoped, tag = 'scoped memory for tpu_custom_call.1']
    #allocation4 [shape = 's32[1]{0}', space=sflag, size = 0x4, scoped, tag = 'scoped memory for tpu_custom_call.1']
    #allocation5 [shape = 'u8[4096]{0}', space=vmem, size = 0x1000, scoped, tag = 'input window, operand 1, single buffered']
    #allocation6 [shape = 's32[1]{0}', space=sflag, size = 0x4, scoped, tag = 'scoped memory for tpu_custom_call.1']
    #allocation7 [shape = 'u8[4096]{0}', space=vmem, size = 0x1000, scoped, tag = 'input window, operand 2, single buffered']
    #allocation8 [shape = 'u8[512]{0}', space=vmem, size = 0x400, scoped, tag = 'output window, operand 0, single buffered']
    %8 = vsyncpa [#allocation3], 0
    %9 = vsyncpa [#allocation6], 0
    %10 = vsyncpa [#allocation4], 0
    // Predicated region
    $region2: #{tpu_custom_call.1} parent=1 // pred_check
      _
    $region3: #{tpu_custom_call.1} parent=1 // pred_check_branch
      %12 = sbr.rel (0) target = $region5
    $region4: #{tpu_custom_call.1} parent=1 // pred_region
      %s14 = ssub.s32 128, 128
      %15 = vsyncadd [#allocation3], %s14
      %s17 = sshll.u32 [#allocation2], 4
      %s18 = int_to_ptr.vmem [resolvable:$true] %s17
      %20 = dma.hbm_to_vmem [thread:$0]  %s0, 128, %s18, [#allocation3]
    $region5: #{tpu_custom_call.1} parent=1 // pred_fallthru
      _
    // Predicated region
    $region6: #{tpu_custom_call.1} parent=1 // pred_check
      _
    $region7: #{tpu_custom_call.1} parent=1 // pred_check_branch
      %22 = sbr.rel (0) target = $region9
    $region8: #{tpu_custom_call.1} parent=1 // pred_region
      %s24 = ssub.s32 128, 128
      %25 = vsyncadd [#allocation6], %s24
      %s27 = sshll.u32 [#allocation5], 4
      %s28 = int_to_ptr.vmem [resolvable:$true] %s27
      %30 = dma.hbm_to_vmem [thread:$0]  %s1, 128, %s28, [#allocation6]
    $region9: #{tpu_custom_call.1} parent=1 // pred_fallthru
      _
    // Predicated region
    $region10: #{tpu_custom_call.1} parent=1 // pred_check
      _
    $region11: #{tpu_custom_call.1} parent=1 // pred_check_branch
      %32 = sbr.rel (0) target = $region13
    $region12: #{tpu_custom_call.1} parent=1 // pred_region
      %s34 = ssub.s32 128, 128
      %35 = vsyncadd [#allocation6], %s34
      %s37 = sshll.u32 [#allocation7], 4
      %s38 = int_to_ptr.vmem [resolvable:$true] %s37
      %40 = dma.hbm_to_vmem [thread:$0]  %s2, 128, %s38, [#allocation6]
    $region13: #{tpu_custom_call.1} parent=1 // pred_fallthru
      _
    // Predicated region
    $region14: #{tpu_custom_call.1} parent=1 // pred_check
      _
    $region15: #{tpu_custom_call.1} parent=1 // pred_check_branch
      %42 = sbr.rel (0) target = $region17
    $region16: #{tpu_custom_call.1} parent=1 // pred_region
      %43 = dma.done [#allocation3], 128
    $region17: #{tpu_custom_call.1} parent=1 // pred_fallthru
      _
    // Predicated region
    $region18: #{tpu_custom_call.1} parent=1 // pred_check
      _
    $region19: #{tpu_custom_call.1} parent=1 // pred_check_branch
      %45 = sbr.rel (0) target = $region21
    $region20: #{tpu_custom_call.1} parent=1 // pred_region
      %46 = dma.done [#allocation6], 128
    $region21: #{tpu_custom_call.1} parent=1 // pred_fallthru
      _
    // Predicated region
    $region22: #{tpu_custom_call.1} parent=1 // pred_check
      _
    $region23: #{tpu_custom_call.1} parent=1 // pred_check_branch
      %48 = sbr.rel (0) target = $region25
    $region24: #{tpu_custom_call.1} parent=1 // pred_region
      %49 = dma.done [#allocation6], 128
    $region25: #{tpu_custom_call.1} parent=1 // pred_fallthru
      _
    %p50 = scmp.eq.s32.totalorder 0, 0
    // Predicated region
    $region26: #{tpu_custom_call.1} parent=1 // pred_check
      %p51 = pneg %p50
    $region27: #{tpu_custom_call.1} parent=1 // pred_check_branch
      %53 = sbr.rel (%p51) target = $region29
    $region28: #{tpu_custom_call.1} parent=1 // pred_region
      %54 = vst [vmem:[#allocation8] sm:$0x1] 0.0
    $region29: #{tpu_custom_call.1} parent=1 // pred_fallthru
      _
    %v55 = vld [vmem:[#allocation8] sm:$0x1]
    %v56 = vld [vmem:[#allocation2] sm:$0xff]
    %v57 = vld [vmem:[#allocation5] sm:$0xff]
    %v58 = vld [vmem:[#allocation7] sm:$0xff]
    %v59 = vsub.f32 %v56, %v57
    %v60 = vadd.f32 %v59, 1e-06
    %v61 = vsub.f32 %v56, %v58
    %v62 = vadd.f32 %v61, 1e-06
    %v63 = vmul.f32 %v60, %v60
    %vm64 = vcmask 261120
    %v65 = vsel %vm64, %v63, 0.0
    %66 = vadd.xlane.f32.xlu0 %v65
    %v67 = vpop.xlane.xlu0 %66
    %v68 = vrsqrt.pop %v67
    %v69 = vmul.f32 %v67, %v68
    %vm70 = vcmp.eq.f32.partialorder %v67, inf
    %v71 = vsel %vm70, %v67, %v69
    %vm72 = vcmp.eq.f32.partialorder %v67, 0.0
    %v73 = vand.u32 %v67, 2147483648
    %v74 = vsel %vm72, %v73, %v71
    %v75 = vmul.f32 %v62, %v62
    %v76 = vsel %vm64, %v75, 0.0
    %77 = vadd.xlane.f32.xlu0 %v76
    %v78 = vpop.xlane.xlu0 %77
    %v79 = vrsqrt.pop %v78
    %v80 = vmul.f32 %v78, %v79
    %vm81 = vcmp.eq.f32.partialorder %v78, inf
    %v82 = vsel %vm81, %v78, %v80
    %vm83 = vcmp.eq.f32.partialorder %v78, 0.0
    %v84 = vand.u32 %v78, 2147483648
    %v85 = vsel %vm83, %v84, %v82
    %v86 = vsub.f32 %v74, %v85
    %v87 = vadd.f32 %v86, 5.0
    %v88 = vmax.f32 %v87, 0.0
    %v89 = vlaneseq
    %v90 = vshrl.u32 %v89, 7
    %s91 = smul.u32 0, 8
    %v92 = vstv %s91
    %v93 = vadd.s32 %v92, %v90
    %vm94 = vcmp.lt.s32.totalorder %v93, 8
    %v95 = vsel %vm94, %v88, 0.0
    %vm96 = vcmask 7168
    %v97 = vsel %vm96, %v95, 0.0
    %98 = vadd.xlane.f32.xlu0 %v97
    %v99 = vpop.xlane.xlu0 %98
    %v100 = vrot.slane %v99, 4
    %v101 = vadd.f32 %v99, %v100
    %v102 = vrot.slane %v101, 2
    %v103 = vadd.f32 %v101, %v102
    %v104 = vrot.slane %v103, 1
    %v105 = vadd.f32 %v103, %v104
    %s106 = vtos %v105
    %v107 = vstv %s106
    %v108 = vadd.f32 %v55, %v107
    %109 = vst [vmem:[#allocation8] sm:$0x1] %v108
    // Predicated region
    $region30: #{tpu_custom_call.1} parent=1 // pred_check
      %p110 = pneg %p50
    $region31: #{tpu_custom_call.1} parent=1 // pred_check_branch
      %112 = sbr.rel (%p110) target = $region33
    $region32: #{tpu_custom_call.1} parent=1 // pred_region
      %v113 = vld [vmem:[#allocation8] sm:$0x1]
      %v114 = vmul.f32 %v113, 0.125
      %115 = vst [vmem:[#allocation8] sm:$0x1] %v114
    $region33: #{tpu_custom_call.1} parent=1 // pred_fallthru
      _
    // Predicated region
    $region34: #{tpu_custom_call.1} parent=1 // pred_check
      _
    $region35: #{tpu_custom_call.1} parent=1 // pred_check_branch
      %117 = sbr.rel (0) target = $region37
    $region36: #{tpu_custom_call.1} parent=1 // pred_region
      %s119 = ssub.s32 16, 16
      %120 = vsyncadd [#allocation4], %s119
      %s122 = sshll.u32 [#allocation8], 4
      %s123 = int_to_ptr.vmem [resolvable:$true] %s122
      %125 = dma.vmem_to_hbm [thread:$0]  %s123, 16, %s3, [#allocation4]
    $region37: #{tpu_custom_call.1} parent=1 // pred_fallthru
      _
    // Predicated region
    $region38: #{tpu_custom_call.1} parent=1 // pred_check
      _
    $region39: #{tpu_custom_call.1} parent=1 // pred_check_branch
      %127 = sbr.rel (0) target = $region41
    $region40: #{tpu_custom_call.1} parent=1 // pred_region
      %128 = dma.done [#allocation4], 16
    $region41: #{tpu_custom_call.1} parent=1 // pred_fallthru
      _
    %129 = vsyncpa [#allocation3], 1
    %130 = vsyncpa [#allocation6], 1
    %131 = vsyncpa [#allocation4], 1

</llo_original>
